<compile_context>
chip_gen: v5e
topology: v5e:2x2
jax: 0.10.0
libtpu: 0.0.40
codegen_flags: <defaults>
</compile_context>

<pallas_src>
import math

import jax
import jax.numpy as jnp
from jax.experimental import pallas as pl
from jax.experimental.pallas import tpu as pltpu


def _mul_kernel(a_ref, w_ref, b_ref, o_ref):
    # a_ref: (rows, 1)   w_ref: (1, d_model)   b_ref: (1, d_model) f32
    prod = a_ref[...] * w_ref[...]                      # broadcast FMA on the VPU
    o_ref[...] = (prod.astype(jnp.float32) + b_ref[...]).astype(o_ref.dtype)


def _fold_kernel(a_ref, e_ref, b_ref, o_ref):
    # a_ref: (rows, g)          g action scalars per lane-dense output slab row
    # e_ref: (g, g*d_model)     block-diagonal expansion of the Linear weight
    # b_ref: (1, g*d_model)     tiled bias (f32)
    acc = jnp.dot(a_ref[...], e_ref[...], preferred_element_type=jnp.float32)
    o_ref[...] = (acc + b_ref[...]).astype(o_ref.dtype)


def action_encoder_forward(action, weight, bias, *, force_pallas=False):
    """action: (bs, act_dim); weight: (d_model, 1); bias: (d_model,).

    Returns (bs, act_dim, d_model) = Linear(1, d_model)(action[..., None]).
    """
    bs, act_dim = action.shape
    d_model = weight.shape[0]
    assert weight.shape == (d_model, 1)
    assert bias.shape == (d_model,)

    in_dtype = jnp.result_type(action.dtype, weight.dtype)
    out_dtype = jnp.result_type(action.dtype, weight.dtype, bias.dtype)
    in_isz = jnp.dtype(in_dtype).itemsize
    out_isz = jnp.dtype(out_dtype).itemsize

    n = bs * act_dim
    out_bytes = n * d_model * out_isz

    w_row = weight.reshape(1, d_model).astype(in_dtype)
    b_f32 = bias.astype(jnp.float32)

    # --- small-problem fast path: Pallas launch overhead would dominate and
    # XLA fuses this broadcast-FMA into neighbours for free. ---
    if (not force_pallas) and out_bytes < (1 << 20):
        prod = action[..., None].astype(in_dtype) * w_row.reshape(1, 1, d_model)
        return (prod.astype(jnp.float32)
                + b_f32.reshape(1, 1, d_model)).astype(out_dtype)

    # --- fold factor g: make the output lane (last) dim a multiple of 128 so
    # stores are unmasked.  Only fold when it divides n (no pad/slice copy) and
    # the expansion matrix stays tiny. ---
    g = 1
    if d_model % 128 != 0:
        lcm = d_model * 128 // math.gcd(d_model, 128)
        g_min = lcm // d_model
        e_bytes = g_min * lcm * in_isz
        if n % g_min == 0 and (n // g_min) >= 8 and e_bytes <= (2 << 20):
            g = g_min
            # Widen (still dividing n) for denser stores / contiguous DMA.
            while (g * 2 <= 128 and (g * 2) * d_model <= 1024
                   and n % (g * 2) == 0 and (n // (g * 2)) >= 8):
                g *= 2
    width = g * d_model
    n_rows = n // g                       # rows of the folded 2-D output slab

    a2d = action.reshape(n_rows, g).astype(in_dtype)
    if g == 1:
        kernel = _mul_kernel
        w_arg = w_row                                         # (1, d_model)
        w_block = (1, d_model)
    else:
        kernel = _fold_kernel
        # E[i, i*d_model + d] = W[d, 0]  (block diagonal expansion matrix).
        w_arg = jnp.kron(jnp.eye(g, dtype=in_dtype), w_row)   # (g, width)
        w_block = (g, width)
    b_arg = jnp.tile(b_f32.reshape(1, d_model), (1, g))       # (1, width) f32

    # --- row-tile sizing: budget by bytes per pipeline buffer (output block +
    # 128-lane-padded action block), x2 double buffering stays well under the
    # smallest scoped-VMEM default (v5e: 16 MiB). ---
    sub = max(8, 32 // out_isz)           # sublane tile of the output dtype
    per_buf_budget = 5 << 20
    row_bytes = width * out_isz + 128 * in_isz
    if n_rows <= sub:
        row_block = n_rows                # single full-extent block (legal)
    else:
        row_block = min(per_buf_budget // row_bytes, n_rows)
        row_block = max(sub, (row_block // sub) * sub)
        if row_block >= n_rows:
            # Keep >= 2 grid steps so v7x can shard tiles across both TCs.
            half = -(-n_rows // 2)
            row_block = max(sub, -(-half // sub) * sub)

    grid = (pl.cdiv(n_rows, row_block),)  # ragged last block handled by Pallas

    out2d = pl.pallas_call(
        kernel,
        out_shape=jax.ShapeDtypeStruct((n_rows, width), out_dtype),
        grid=grid,
        in_specs=[
            pl.BlockSpec((row_block, g), lambda i: (i, 0)),
            pl.BlockSpec(w_block, lambda i: (0, 0)),       # resident weight / E
            pl.BlockSpec((1, width), lambda i: (0, 0)),    # resident bias
        ],
        out_specs=pl.BlockSpec((row_block, width), lambda i: (i, 0)),
        compiler_params=pltpu.CompilerParams(
            dimension_semantics=("parallel",),
        ),
        cost_estimate=pl.CostEstimate(
            flops=2 * n * d_model,
            transcendentals=0,
            bytes_accessed=(out_bytes + n * in_isz
                            + w_arg.size * in_isz + b_arg.size * 4),
        ),
    )(a2d, w_arg, b_arg)

    # Row-major metadata reshape: out2d[s, i*d_model + d] == out[s*g + i, d].
    return out2d.reshape(bs, act_dim, d_model)


def _ref_forward(action, weight, bias):
    """Pure-JAX reference of the PyTorch forward (computed in f32)."""
    d_model = weight.shape[0]
    prod = action[..., None].astype(jnp.float32) * weight.reshape(1, 1, d_model).astype(jnp.float32)
    return prod + bias.reshape(1, 1, d_model).astype(jnp.float32)


if __name__ == "__main__":
    def make_params(k, d_model, dtype):
        # nn.Linear(1, d_model) with w_init: orthogonal_ on (d_model, 1) is a
        # unit-norm column; bias is constant 0.
        w_col = jax.random.normal(k, (d_model, 1), dtype=jnp.float32)
        weight = (w_col / jnp.linalg.norm(w_col)).astype(dtype)
        bias = jnp.zeros((d_model,), dtype=dtype)
        return weight, bias

    key = jax.random.PRNGKey(0)
    cases = [
        # (bs, act_dim, d_model, dtype, force_pallas)
        (2, 4, 32, jnp.float32, False),    # tiny -> small-problem fast path
        (2, 4, 32, jnp.float32, True),     # tiny, forced through Pallas
        (64, 16, 32, jnp.float32, True),   # folded lane-dense output, 2-step grid
        (4, 8, 128, jnp.float32, True),    # d_model % 128 == 0, 2-step grid
        (4, 16, 32, jnp.bfloat16, True),   # bf16, folded lane-dense output
    ]
    for idx, (bs, act_dim, d_model, dtype, force) in enumerate(cases):
        ka, kw = jax.random.split(jax.random.fold_in(key, idx))
        action = jax.random.normal(ka, (bs, act_dim), dtype=jnp.float32).astype(dtype)
        weight, bias = make_params(kw, d_model, dtype)

        out = action_encoder_forward(action, weight, bias, force_pallas=force)
        out = jax.block_until_ready(out)
        assert out.shape == (bs, act_dim, d_model), f"case {idx}: bad shape {out.shape}"

        ref = _ref_forward(action, weight, bias).astype(out.dtype)
        tol = 2e-2 if out.dtype == jnp.bfloat16 else 1e-6
        ok = jnp.allclose(out.astype(jnp.float32), ref.astype(jnp.float32),
                          atol=tol, rtol=tol)
        assert bool(ok), f"case {idx}: value mismatch"

    print("KERNEL_OK")
</pallas_src>

<mosaic_0001>
module attributes {stable_mosaic.version = 11 : i64} {
  func.func @_mul_kernel(%arg0: i32, %arg1: memref<8x1xf32, #tpu.memory_space<vmem>>, %arg2: memref<1x32xf32, #tpu.memory_space<vmem>>, %arg3: memref<1x32xf32, #tpu.memory_space<vmem>>, %arg4: memref<8x32xf32, #tpu.memory_space<vmem>>) attributes {dimension_semantics = [#tpu.dimension_semantics<parallel>], iteration_bounds = array<i64: 1>, scalar_prefetch = 0 : i64, scratch_operands = 0 : i64, tpu.core_type = #tpu.core_type<tc>, window_params = [{transform_indices = @transform_0, window_bounds = array<i64: 8, 1>}, {pipeline_mode = #tpu.pipeline_mode<synchronous>, transform_indices = @transform_1, window_bounds = array<i64: 1, 32>}, {pipeline_mode = #tpu.pipeline_mode<synchronous>, transform_indices = @transform_2, window_bounds = array<i64: 1, 32>}, {transform_indices = @transform_3, window_bounds = array<i64: 8, 32>}]} {
    %c0 = arith.constant 0 : index
    %c0_0 = arith.constant 0 : index
    %0 = vector.load %arg1[%c0, %c0_0] : memref<8x1xf32, #tpu.memory_space<vmem>>, vector<8x1xf32>
    %c0_1 = arith.constant 0 : index
    %c0_2 = arith.constant 0 : index
    %1 = vector.load %arg2[%c0_1, %c0_2] : memref<1x32xf32, #tpu.memory_space<vmem>>, vector<1x32xf32>
    %2 = vector.broadcast %0 : vector<8x1xf32> to vector<8x32xf32>
    %3 = vector.broadcast %1 : vector<1x32xf32> to vector<8x32xf32>
    %4 = arith.mulf %2, %3 : vector<8x32xf32>
    %c0_3 = arith.constant 0 : index
    %c0_4 = arith.constant 0 : index
    %5 = vector.load %arg3[%c0_3, %c0_4] : memref<1x32xf32, #tpu.memory_space<vmem>>, vector<1x32xf32>
    %6 = vector.broadcast %5 : vector<1x32xf32> to vector<8x32xf32>
    %7 = arith.addf %4, %6 : vector<8x32xf32>
    %c0_5 = arith.constant 0 : index
    %c0_6 = arith.constant 0 : index
    %8 = vector.load %arg4[%c0_5, %c0_6] : memref<8x32xf32, #tpu.memory_space<vmem>>, vector<8x32xf32>
    tpu.vector_store %arg4[%c0_5, %c0_6], %7 {strides = array<i32>} : memref<8x32xf32, #tpu.memory_space<vmem>>, vector<8x32xf32>,
    return
  }
  func.func @transform_0(%arg0: i32) -> (i32, i32) {
    %c0_i32 = arith.constant 0 : i32
    %c0_i32_0 = arith.constant 0 : i32
    return %arg0, %c0_i32 : i32, i32
  }
  func.func @transform_1(%arg0: i32) -> (i32, i32) {
    %c0_i32 = arith.constant 0 : i32
    %c0_i32_0 = arith.constant 0 : i32
    %c0_i32_1 = arith.constant 0 : i32
    return %c0_i32, %c0_i32_0 : i32, i32
  }
  func.func @transform_2(%arg0: i32) -> (i32, i32) {
    %c0_i32 = arith.constant 0 : i32
    %c0_i32_0 = arith.constant 0 : i32
    %c0_i32_1 = arith.constant 0 : i32
    return %c0_i32, %c0_i32_0 : i32, i32
  }
  func.func @transform_3(%arg0: i32) -> (i32, i32) {
    %c0_i32 = arith.constant 0 : i32
    %c0_i32_0 = arith.constant 0 : i32
    return %arg0, %c0_i32 : i32, i32
  }
}

</mosaic_0001>

<llo_original>
// kernel: tpu_custom_call.1
$region0: #{tpu_custom_call.1}
  #allocation0 [shape = 'u32[]', space=smem, size = 0x4, offset = 0x4, fixed_abs, tag = 'smem constant byte address 0x4 - core index']
  #allocation1 [shape = 'u32[72,128]{1,0:T(1,128)}', space=vmem, size = 0x9000, scoped, tag = 'internal scratch']
  %s0 = inlined_call_operand.vmem [shape: f32[8,1], index: 0, kind: input, shape index: {}]
  %s1 = inlined_call_operand.vmem [shape: f32[1,32], index: 1, kind: input, shape index: {}]
  %s2 = inlined_call_operand.vmem [shape: f32[1,32], index: 2, kind: input, shape index: {}]
  %s3 = inlined_call_operand.hbm [shape: f32[8,32], index: 3, kind: output, shape index: {}]
  %s4 = sld [smem:[#allocation0]]
  $region22: #{tpu_custom_call.1} parent=0
    _
  %s6 = ssub.s32 1, %s4
  %s7 = scalar_select 0, %s6, %s4
  $region1: #{tpu_custom_call.1} parent=0
    #allocation2 [shape = 'u8[4096]{0}', space=vmem, size = 0x1000, scoped, tag = 'output window, operand 0, single buffered']
    #allocation3 [shape = 's32[1]{0}', space=sflag, size = 0x4, scoped, tag = 'scoped memory for tpu_custom_call.1']
    %8 = vsyncpa [#allocation3], 0
    // Predicated region
    $region2: #{tpu_custom_call.1} parent=1 // pred_check
      _
    $region3: #{tpu_custom_call.1} parent=1 // pred_check_branch
      %10 = sbr.rel (0) target = $region5
    $region4: #{tpu_custom_call.1} parent=1 // pred_region
      _
    $region5: #{tpu_custom_call.1} parent=1 // pred_fallthru
      _
    // Predicated region
    $region6: #{tpu_custom_call.1} parent=1 // pred_check
      _
    $region7: #{tpu_custom_call.1} parent=1 // pred_check_branch
      %12 = sbr.rel (0) target = $region9
    $region8: #{tpu_custom_call.1} parent=1 // pred_region
      _
    $region9: #{tpu_custom_call.1} parent=1 // pred_fallthru
      _
    // Predicated region
    $region10: #{tpu_custom_call.1} parent=1 // pred_check
      _
    $region11: #{tpu_custom_call.1} parent=1 // pred_check_branch
      %14 = sbr.rel (0) target = $region13
    $region12: #{tpu_custom_call.1} parent=1 // pred_region
      _
    $region13: #{tpu_custom_call.1} parent=1 // pred_fallthru
      _
    %v15 = vld [vmem:[%s0] sm:$0xff]
    %v16 = vld [vmem:[%s1] sm:$0x1]
    %18 = vset.pattern.permute.xlu0 0
    %19 = vperm.xlu0 %18, %v15
    %v20 = vpop.permute.xlu0 %19
    %v23 = vperm.slane %v16, 0
    %v25 = vmul.f32 %v20, %v23
    %v26 = vld [vmem:[%s2] sm:$0x1]
    %v28 = vperm.slane %v26, 0
    %v30 = vadd.f32 %v25, %v28
    %vm31 = vcmask 261120
    %32 = vst.msk [vmem:[#allocation2] sm:$0xff] %vm31, %v30
    // Predicated region
    $region14: #{tpu_custom_call.1} parent=1 // pred_check
      _
    $region15: #{tpu_custom_call.1} parent=1 // pred_check_branch
      %34 = sbr.rel (0) target = $region17
    $region16: #{tpu_custom_call.1} parent=1 // pred_region
      %36 = vsyncadd [#allocation3], 0
      %s38 = sshll.u32 [#allocation2], 4
      %s39 = int_to_ptr.vmem [resolvable:$true] %s38
      %s40 = sshll.u32 %s3, 4
      %s41 = int_to_ptr.hbm [resolvable:$true] %s40
      %43 = dma.vmem_to_hbm [thread:$0]  %s39, 128, %s41, [#allocation3]
    $region17: #{tpu_custom_call.1} parent=1 // pred_fallthru
      _
    // Predicated region
    $region18: #{tpu_custom_call.1} parent=1 // pred_check
      _
    $region19: #{tpu_custom_call.1} parent=1 // pred_check_branch
      %45 = sbr.rel (0) target = $region21
    $region20: #{tpu_custom_call.1} parent=1 // pred_region
      %47 = dma.done [#allocation3], 128
    $region21: #{tpu_custom_call.1} parent=1 // pred_fallthru
      _
    %48 = vsyncpa [#allocation3], 1

</llo_original>
